<compile_context>
chip_gen: v6e
topology: v6e:2x2x1
jax: 0.10.0
libtpu: 0.0.40
codegen_flags: <defaults>
</compile_context>

<pallas_src>
import functools

import jax
import jax.numpy as jnp
from jax.experimental import pallas as pl
from jax.experimental.pallas import tpu as pltpu

_LANE = 128
_SUB = 8
_MAX_TILE_ROWS = 8192   # 8192 * 128 * 4B = 4 MiB per f32 input block.
_CHUNK_ROWS = 256       # in-kernel reduction sub-chunk (256x128 f32 = 32 vregs)


def _focal_loss_kernel(pred_ref, target_ref, out_ref, *,
                       alpha, gamma, n_valid_rows, needs_mask, chunk_rows):
    i = pl.program_id(0)
    rows, lane = pred_ref.shape            # static Python ints
    n_chunks = rows // chunk_rows          # rows is a multiple of chunk_rows

    def chunk_loss(c, masked):
        r0 = c * chunk_rows
        if not isinstance(r0, int):
            r0 = pl.multiple_of(r0, chunk_rows)
        x = pred_ref[pl.ds(r0, chunk_rows), :].astype(jnp.float32)
        t = target_ref[pl.ds(r0, chunk_rows), :].astype(jnp.float32)

        # Shared transcendental path: e = exp(-|x|) feeds sigmoid and BCE.
        e = jnp.exp(-jnp.abs(x))
        d = 1.0 + e
        inv = pl.reciprocal(d, approx=True)
        inv = inv * (2.0 - d * inv)                  # one Newton step
        sig = jnp.where(x >= 0.0, inv, e * inv)      # sigmoid(x)

        is_pos = t == 1.0
        one_minus_pt = jnp.where(is_pos, 1.0 - sig, sig)   # 1 - pt
        alpha_t = jnp.where(is_pos, jnp.float32(alpha), jnp.float32(1.0 - alpha))
        if gamma == 2.0:
            fw = alpha_t * one_minus_pt * one_minus_pt
        else:
            fw = alpha_t * one_minus_pt ** jnp.float32(gamma)

        # Numerically stable BCE-with-logits (general target, like PyTorch):
        #   max(x, 0) - x*t + log1p(exp(-|x|))
        bce = jnp.maximum(x, 0.0) - x * t + jnp.log1p(e)
        loss = bce * fw

        if masked:
            # Row-level validity test (last ragged grid block only).  Must stay
            # a select (not a multiply): OOB rows may contain garbage/NaN.
            ridx = jax.lax.broadcasted_iota(jnp.int32, (chunk_rows, lane), 0)
            lim = n_valid_rows - i * rows - c * chunk_rows
            loss = jnp.where(ridx < lim, loss, 0.0)

        # (chunk_rows, 128) -> (8, 128) partial sums (chunk_rows multiple of 8).
        return loss.reshape(chunk_rows // _SUB, _SUB, lane).sum(axis=0)

    def block_sum(masked):
        if n_chunks == 1:
            return chunk_loss(0, masked)

        def body(c, acc):
            return acc + chunk_loss(c, masked)

        return jax.lax.fori_loop(0, n_chunks, body,
                                 jnp.zeros((_SUB, lane), jnp.float32))

    if needs_mask:
        last = pl.num_programs(0) - 1

        @pl.when(i != last)
        def _():
            out_ref[0] = block_sum(False)

        @pl.when(i == last)
        def _():
            out_ref[0] = block_sum(True)
    else:
        out_ref[0] = block_sum(False)


def _focal_loss_elems(pred, target, alpha, gamma):
    """Pure-JAX per-element focal loss (only used for the <128-elem lane tail)."""
    x = pred.astype(jnp.float32)
    t = target.astype(jnp.float32)
    e = jnp.exp(-jnp.abs(x))
    sig = jnp.where(x >= 0.0, 1.0 / (1.0 + e), e / (1.0 + e))
    one_minus_pt = jnp.where(t == 1.0, 1.0 - sig, sig)
    fw = jnp.where(t == 1.0, jnp.float32(alpha), jnp.float32(1.0 - alpha)) \
        * one_minus_pt ** jnp.float32(gamma)
    bce = jnp.maximum(x, 0.0) - x * t + jnp.log1p(e)
    return bce * fw


def focal_loss_pallas(pred, target, alpha=0.25, gamma=2.0,
                      max_tile_rows=_MAX_TILE_ROWS):
    """Mean sigmoid focal loss over all elements (matches FocalLoss.forward).

    pred may be f32 or bf16; target may be any float/int/bool dtype — the
    kernel upcasts to f32 in VMEM, so narrower inputs cut HBM traffic ~2.5x.
    """
    assert pred.shape == target.shape
    total = int(pred.size)
    assert total > 0

    pred_flat = pred.reshape(-1)
    target_flat = target.reshape(-1)

    n_rows = total // _LANE          # full 128-lane rows handled by the kernel
    n_aligned = n_rows * _LANE
    tail = total - n_aligned

    loss_sum = jnp.float32(0.0)

    if n_rows > 0:
        if tail == 0:
            # Pure reshape — no pad, no copy, even when n_rows % 8 != 0.
            pred2 = pred_flat.reshape(n_rows, _LANE)
            target2 = target_flat.reshape(n_rows, _LANE)
        else:
            # Aligned prefix only; <128-element tail handled in pure JAX below.
            pred2 = pred_flat[:n_aligned].reshape(n_rows, _LANE)
            target2 = target_flat[:n_aligned].reshape(n_rows, _LANE)

        # ---- tile selection: big lane-dense blocks, >=2 blocks for megacore.
        rows_ceil8 = pl.cdiv(n_rows, _SUB) * _SUB
        tile_rows = min(int(max_tile_rows),
                        pl.cdiv(pl.cdiv(n_rows, 2), _SUB) * _SUB)
        tile_rows = max(_SUB, min(tile_rows, rows_ceil8))
        chunk_rows = max(_SUB, min(_CHUNK_ROWS, tile_rows))
        tile_rows = (tile_rows // chunk_rows) * chunk_rows   # multiple of chunk
        num_blocks = pl.cdiv(n_rows, tile_rows)
        needs_mask = (num_blocks * tile_rows) != n_rows

        kernel = functools.partial(_focal_loss_kernel,
                                   alpha=float(alpha),
                                   gamma=float(gamma),
                                   n_valid_rows=n_rows,
                                   needs_mask=bool(needs_mask),
                                   chunk_rows=int(chunk_rows))

        in_block_bytes = tile_rows * _LANE * (pred2.dtype.itemsize
                                              + target2.dtype.itemsize)
        # Double-buffered inputs + headroom; explicit so v5e's 16 MiB scoped
        # default doesn't reject 8192-row f32 blocks (physical VMEM is fine).
        vmem_bytes = int(min(2 * in_block_bytes + (8 << 20), 48 << 20))

        bytes_acc = (pred2.size * pred2.dtype.itemsize
                     + target2.size * target2.dtype.itemsize
                     + num_blocks * _SUB * _LANE * 4)

        partials = pl.pallas_call(
            kernel,
            out_shape=jax.ShapeDtypeStruct((num_blocks, _SUB, _LANE),
                                           jnp.float32),
            grid=(num_blocks,),
            in_specs=[
                pl.BlockSpec((tile_rows, _LANE), lambda i: (i, 0)),
                pl.BlockSpec((tile_rows, _LANE), lambda i: (i, 0)),
            ],
            out_specs=pl.BlockSpec((1, _SUB, _LANE), lambda i: (i, 0, 0)),
            compiler_params=pltpu.CompilerParams(
                dimension_semantics=("parallel",),
                vmem_limit_bytes=vmem_bytes),
            cost_estimate=pl.CostEstimate(flops=20 * n_aligned,
                                          transcendentals=3 * n_aligned,
                                          bytes_accessed=int(bytes_acc)),
        )(pred2, target2)
        loss_sum = loss_sum + jnp.sum(partials)

    if tail > 0:
        loss_sum = loss_sum + jnp.sum(
            _focal_loss_elems(pred_flat[n_aligned:], target_flat[n_aligned:],
                              float(alpha), float(gamma)))

    return loss_sum / jnp.float32(total)


def focal_loss_ref(pred, target, alpha=0.25, gamma=2.0):
    pred = pred.astype(jnp.float32)
    target = target.astype(jnp.float32)
    pred_sigmoid = jax.nn.sigmoid(pred)
    pt = jnp.where(target == 1.0, pred_sigmoid, 1.0 - pred_sigmoid)
    fw = jnp.where(target == 1.0, alpha, 1.0 - alpha) * (1.0 - pt) ** gamma
    bce = (jnp.maximum(pred, 0.0) - pred * target
           + jnp.log1p(jnp.exp(-jnp.abs(pred))))
    return jnp.mean(bce * fw)


if __name__ == "__main__":
    key = jax.random.PRNGKey(0)
    k1, k2 = jax.random.split(key)

    # NCHW logits and binary targets, as the NanoDet classification head emits.
    N, C, H, W = 2, 4, 16, 16
    pred = jax.random.normal(k1, (N, C, H, W), dtype=jnp.float32) * 2.0
    target = jax.random.bernoulli(k2, p=0.1, shape=(N, C, H, W)).astype(
        jnp.float32)

    loss = focal_loss_pallas(pred, target, alpha=0.25, gamma=2.0)
    loss = jax.block_until_ready(loss)

    ref = focal_loss_ref(pred, target, alpha=0.25, gamma=2.0)
    assert jnp.allclose(loss, ref, rtol=1e-5, atol=1e-6), (loss, ref)

    # Exercise a ragged-rows (no-pad) path: total % 128 == 0, rows % 8 != 0.
    pred_r = jax.random.normal(k1, (3, 5, 128), dtype=jnp.float32)
    target_r = jax.random.bernoulli(k2, p=0.1, shape=(3, 5, 128)).astype(
        jnp.float32)
    loss_r = jax.block_until_ready(focal_loss_pallas(pred_r, target_r))
    ref_r = focal_loss_ref(pred_r, target_r)
    assert jnp.allclose(loss_r, ref_r, rtol=1e-5, atol=1e-6), (loss_r, ref_r)

    print("KERNEL_OK")
</pallas_src>

<mosaic_0001>
module attributes {stable_mosaic.version = 11 : i64} {
  func.func @_focal_loss_kernel(%arg0: i32, %arg1: memref<8x128xf32, #tpu.memory_space<vmem>>, %arg2: memref<8x128xf32, #tpu.memory_space<vmem>>, %arg3: memref<1x8x128xf32, #tpu.memory_space<vmem>>) attributes {dimension_semantics = [#tpu.dimension_semantics<parallel>], iteration_bounds = array<i64: 2>, scalar_prefetch = 0 : i64, scratch_operands = 0 : i64, tpu.core_type = #tpu.core_type<tc>, window_params = [{transform_indices = @transform_0, window_bounds = array<i64: 8, 128>}, {transform_indices = @transform_1, window_bounds = array<i64: 8, 128>}, {transform_indices = @transform_2, window_bounds = array<i64: 1, 8, 128>}]} {
    %c0 = arith.constant 0 : index
    %c0_0 = arith.constant 0 : index
    %0 = vector.load %arg1[%c0, %c0_0] : memref<8x128xf32, #tpu.memory_space<vmem>>, vector<8x128xf32>
    %c0_1 = arith.constant 0 : index
    %c0_2 = arith.constant 0 : index
    %1 = vector.load %arg2[%c0_1, %c0_2] : memref<8x128xf32, #tpu.memory_space<vmem>>, vector<8x128xf32>
    %2 = math.absf %0 : vector<8x128xf32>
    %cst = arith.constant 0.000000e+00 : f32
    %3 = vector.broadcast %cst : f32 to vector<8x128xf32>
    %4 = arith.subf %3, %2 : vector<8x128xf32>
    %5 = math.exp %4 : vector<8x128xf32>
    %cst_3 = arith.constant 1.000000e+00 : f32
    %6 = vector.broadcast %cst_3 : f32 to vector<8x128xf32>
    %7 = arith.addf %6, %5 : vector<8x128xf32>
    %8 = tpu.reciprocal %7 {approx = true} : vector<8x128xf32> -> vector<8x128xf32>
    %9 = arith.mulf %7, %8 : vector<8x128xf32>
    %cst_4 = arith.constant 2.000000e+00 : f32
    %10 = vector.broadcast %cst_4 : f32 to vector<8x128xf32>
    %11 = arith.subf %10, %9 : vector<8x128xf32>
    %12 = arith.mulf %8, %11 : vector<8x128xf32>
    %cst_5 = arith.constant 0.000000e+00 : f32
    %13 = vector.broadcast %cst_5 : f32 to vector<8x128xf32>
    %14 = arith.cmpf oge, %0, %13 : vector<8x128xf32>
    %15 = arith.mulf %5, %12 : vector<8x128xf32>
    %16 = arith.select %14, %12, %15 : vector<8x128xi1>, vector<8x128xf32>
    %cst_6 = arith.constant 1.000000e+00 : f32
    %17 = vector.broadcast %cst_6 : f32 to vector<8x128xf32>
    %18 = arith.cmpf oeq, %1, %17 : vector<8x128xf32>
    %cst_7 = arith.constant 1.000000e+00 : f32
    %19 = vector.broadcast %cst_7 : f32 to vector<8x128xf32>
    %20 = arith.subf %19, %16 : vector<8x128xf32>
    %21 = arith.select %18, %20, %16 : vector<8x128xi1>, vector<8x128xf32>
    %cst_8 = arith.constant 2.500000e-01 : f32
    %cst_9 = arith.constant 7.500000e-01 : f32
    %22 = vector.broadcast %cst_8 : f32 to vector<8x128xf32>
    %23 = vector.broadcast %cst_9 : f32 to vector<8x128xf32>
    %24 = arith.select %18, %22, %23 : vector<8x128xi1>, vector<8x128xf32>
    %25 = arith.mulf %24, %21 : vector<8x128xf32>
    %26 = arith.mulf %25, %21 : vector<8x128xf32>
    %cst_10 = arith.constant 0.000000e+00 : f32
    %27 = vector.broadcast %cst_10 : f32 to vector<8x128xf32>
    %28 = arith.maximumf %0, %27 : vector<8x128xf32>
    %29 = arith.mulf %0, %1 : vector<8x128xf32>
    %30 = arith.subf %28, %29 : vector<8x128xf32>
    %31 = math.log1p %5 : vector<8x128xf32>
    %32 = arith.addf %30, %31 : vector<8x128xf32>
    %33 = arith.mulf %32, %26 : vector<8x128xf32>
    %34 = vector.shape_cast %33 : vector<8x128xf32> to vector<1x8x128xf32>
    %cst_11 = arith.constant dense<0.000000e+00> : vector<8x128xf32>
    %35 = vector.multi_reduction <add>, %34, %cst_11 [0] : vector<1x8x128xf32> to vector<8x128xf32>
    %c0_12 = arith.constant 0 : index
    %c0_13 = arith.constant 0 : index
    %c0_14 = arith.constant 0 : index
    %36 = vector.load %arg3[%c0_12, %c0_13, %c0_14] : memref<1x8x128xf32, #tpu.memory_space<vmem>>, vector<1x8x128xf32>
    %37 = vector.shape_cast %36 : vector<1x8x128xf32> to vector<8x128xf32>
    %38 = vector.shape_cast %35 : vector<8x128xf32> to vector<1x8x128xf32>
    tpu.vector_store %arg3[%c0_12, %c0_13, %c0_14], %38 {strides = array<i32>} : memref<1x8x128xf32, #tpu.memory_space<vmem>>, vector<1x8x128xf32>,
    return
  }
  func.func @transform_0(%arg0: i32) -> (i32, i32) {
    %c0_i32 = arith.constant 0 : i32
    %c0_i32_0 = arith.constant 0 : i32
    return %arg0, %c0_i32 : i32, i32
  }
  func.func @transform_1(%arg0: i32) -> (i32, i32) {
    %c0_i32 = arith.constant 0 : i32
    %c0_i32_0 = arith.constant 0 : i32
    return %arg0, %c0_i32 : i32, i32
  }
  func.func @transform_2(%arg0: i32) -> (i32, i32, i32) {
    %c0_i32 = arith.constant 0 : i32
    %c0_i32_0 = arith.constant 0 : i32
    %c0_i32_1 = arith.constant 0 : i32
    return %arg0, %c0_i32, %c0_i32_0 : i32, i32, i32
  }
}

</mosaic_0001>

<llo_original>
// kernel: tpu_custom_call.1
$region0: #{tpu_custom_call.1}
  #allocation0 [shape = 'u32[]', space=smem, size = 0x4, offset = 0x4, fixed_abs, tag = 'smem constant byte address 0x4 - core index']
  #allocation1 [shape = 'u32[144,128]{1,0:T(1,128)}', space=vmem, size = 0x12000, scoped, tag = 'internal scratch']
  %s0 = inlined_call_operand.hbm [shape: f32[16,128], index: 0, kind: input, shape index: {}]
  %s1 = inlined_call_operand.hbm [shape: f32[16,128], index: 1, kind: input, shape index: {}]
  %s2 = inlined_call_operand.hbm [shape: f32[2,8,128], index: 2, kind: output, shape index: {}]
  %s3 = sld [smem:[#allocation0]]
  $region49: #{tpu_custom_call.1} parent=0
    _
  %s5 = ssub.s32 1, %s3
  %s6 = scalar_select 0, %s5, %s3
  $region1: #{tpu_custom_call.1} parent=0
    #allocation2 [shape = 'u8[8192]{0}', space=vmem, size = 0x2000, scoped, tag = 'input window, operand 0']
    #allocation3 [shape = 's32[2]{0}', space=sflag, size = 0x8, scoped, tag = 'scoped memory for tpu_custom_call.1']
    #allocation4 [shape = 's32[2]{0}', space=sflag, size = 0x8, scoped, tag = 'scoped memory for tpu_custom_call.1']
    #allocation5 [shape = 'u8[8192]{0}', space=vmem, size = 0x2000, scoped, tag = 'input window, operand 1']
    #allocation6 [shape = 's32[2]{0}', space=sflag, size = 0x8, scoped, tag = 'scoped memory for tpu_custom_call.1']
    #allocation7 [shape = 'u8[8192]{0}', space=vmem, size = 0x2000, scoped, tag = 'output window, operand 0']
    %7 = vsyncpa [#allocation3], 0
    %s8 = scalar_lea.sflag [#allocation3], 1
    %9 = vsyncpa %s8, 0
    %10 = vsyncpa [#allocation6], 0
    %s11 = scalar_lea.sflag [#allocation6], 1
    %12 = vsyncpa %s11, 0
    %13 = vsyncpa [#allocation4], 0
    %s14 = scalar_lea.sflag [#allocation4], 1
    %15 = vsyncpa %s14, 0
    loop: start=0, step=1, limit=4
    $region2: #{tpu_custom_call.1} parent=1 // loop_pre_header
      _
    $region3: #{tpu_custom_call.1} parent=1 // loop_header
      %s17 = sphi 0, %s21
      %p18 = scmp.ge.s32.totalorder %s17, 4
      %s27 = sphi 0, %s29
      %s30 = sphi 0, %s27
      %s31 = sphi 0, %s30
      %s47 = sphi 0, %s31
      %s53 = sphi 0, %s55
      %s56 = sphi 0, %s53
      %s57 = sphi 0, %s56
      %s73 = sphi 0, %s57
      %s79 = sphi 0, %s81
      %s82 = sphi 0, %s79
      %s83 = sphi 0, %s82
      %s99 = sphi 0, %s83
    $region4: #{tpu_custom_call.1} parent=1 // loop_header_branch
      %20 = sbr.rel (%p18) target = $region8
    $region5: #{tpu_custom_call.1} parent=1 // loop_body
      %s22 = ssub.s32 %s17, 1
      %s23 = ssub.s32 %s17, 2
      %s24 = sadd.s32 %s17, 1
      %s25 = ssub.s32 %s17, %s24
      %p26 = scmp.eq.s32.totalorder %s25, 0
      %s28 = sadd.s32 %s27, 1
      %s29 = scalar_select %p26, %s27, %s28
      %p32 = pneg %p26
      %p33 = scmp.eq.s32.totalorder %s17, 1
      %p34 = por %p32, %p33
      %p35 = scmp.ne.s32.totalorder %s27, %s30
      %p36 = scmp.eq.s32.totalorder %s17, 0
      %p37 = por %p35, %p36
      %p38 = scmp.ne.s32.totalorder %s27, %s30
      %p39 = scmp.eq.s32.totalorder %s22, 1
      %p40 = por %p38, %p39
      %p41 = scmp.ne.s32.totalorder %s30, %s31
      %p42 = scmp.eq.s32.totalorder %s22, 0
      %p43 = por %p41, %p42
      %p44 = scmp.ne.s32.totalorder %s30, %s31
      %p45 = scmp.eq.s32.totalorder %s23, 1
      %p46 = por %p44, %p45
      %p48 = scmp.ne.s32.totalorder %s31, %s47
      %p49 = scmp.eq.s32.totalorder %s23, 0
      %p50 = por %p48, %p49
      %s51 = ssub.s32 %s17, %s24
      %p52 = scmp.eq.s32.totalorder %s51, 0
      %s54 = sadd.s32 %s53, 1
      %s55 = scalar_select %p52, %s53, %s54
      %p58 = pneg %p52
      %p59 = scmp.eq.s32.totalorder %s17, 1
      %p60 = por %p58, %p59
      %p61 = scmp.ne.s32.totalorder %s53, %s56
      %p62 = scmp.eq.s32.totalorder %s17, 0
      %p63 = por %p61, %p62
      %p64 = scmp.ne.s32.totalorder %s53, %s56
      %p65 = scmp.eq.s32.totalorder %s22, 1
      %p66 = por %p64, %p65
      %p67 = scmp.ne.s32.totalorder %s56, %s57
      %p68 = scmp.eq.s32.totalorder %s22, 0
      %p69 = por %p67, %p68
      %p70 = scmp.ne.s32.totalorder %s56, %s57
      %p71 = scmp.eq.s32.totalorder %s23, 1
      %p72 = por %p70, %p71
      %p74 = scmp.ne.s32.totalorder %s57, %s73
      %p75 = scmp.eq.s32.totalorder %s23, 0
      %p76 = por %p74, %p75
      %s77 = ssub.s32 %s17, %s24
      %p78 = scmp.eq.s32.totalorder %s77, 0
      %s80 = sadd.s32 %s79, 1
      %s81 = scalar_select %p78, %s79, %s80
      %p84 = pneg %p78
      %p85 = scmp.eq.s32.totalorder %s17, 1
      %p86 = por %p84, %p85
      %p87 = scmp.ne.s32.totalorder %s79, %s82
      %p88 = scmp.eq.s32.totalorder %s17, 0
      %p89 = por %p87, %p88
      %p90 = scmp.ne.s32.totalorder %s79, %s82
      %p91 = scmp.eq.s32.totalorder %s22, 1
      %p92 = por %p90, %p91
      %p93 = scmp.ne.s32.totalorder %s82, %s83
      %p94 = scmp.eq.s32.totalorder %s22, 0
      %p95 = por %p93, %p94
      %p96 = scmp.ne.s32.totalorder %s82, %s83
      %p97 = scmp.eq.s32.totalorder %s23, 1
      %p98 = por %p96, %p97
      %p100 = scmp.ne.s32.totalorder %s83, %s99
      %p101 = scmp.eq.s32.totalorder %s23, 0
      %p102 = por %p100, %p101
      %p103 = scmp.le.s32.totalorder 1, %s17
      %p104 = scmp.lt.s32.totalorder %s17, 3
      %p105 = pnand %p103, %p104
      %p106 = pneg %p105
      // Predicated region
      $region9: #{tpu_custom_call.1} parent=5 // pred_check
        _
      $region10: #{tpu_custom_call.1} parent=5 // pred_check_branch
        %108 = sbr.rel (%p105) target = $region12
      $region11: #{tpu_custom_call.1} parent=5 // pred_region
        %s109 = ssub.s32 %s17, 1
      $region12: #{tpu_custom_call.1} parent=5 // pred_fallthru
        _
      %p110 = scmp.lt.s32.totalorder %s17, 2
      // Predicated region
      $region13: #{tpu_custom_call.1} parent=5 // pred_check
        %p111 = pneg %p110
      $region14: #{tpu_custom_call.1} parent=5 // pred_check_branch
        %113 = sbr.rel (%p111) target = $region16
      $region15: #{tpu_custom_call.1} parent=5 // pred_region
        // Predicated region
        $region17: #{tpu_custom_call.1} parent=15 // pred_check
          %p114 = pneg %p37
        $region18: #{tpu_custom_call.1} parent=15 // pred_check_branch
          %116 = sbr.rel (%p114) target = $region20
        $region19: #{tpu_custom_call.1} parent=15 // pred_region
          %s117 = sand.u32 %s27, 1
          %s118 = scalar_lea.sflag [#allocation3], %s117
          %s119 = sand.u32 %s27, 1
          %s120 = smul.addr %s119, 8
          %s121 = scalar_lea.vmem [#allocation2], %s120
          %s123 = ssub.s32 128, 128
          %124 = vsyncadd %s118, %s123
          %s125 = smul.addr %s17, 128
          %s126 = scalar_lea.hbm %s0, %s125
          %s128 = sshll.u32 %s121, 4
          %s129 = int_to_ptr.vmem [resolvable:$true] %s128
          %131 = dma.hbm_to_vmem [thread:$0]  %s126, 128, %s129, %s118
        $region20: #{tpu_custom_call.1} parent=15 // pred_fallthru
          _
        // Predicated region
        $region21: #{tpu_custom_call.1} parent=15 // pred_check
          %p132 = pneg %p63
        $region22: #{tpu_custom_call.1} parent=15 // pred_check_branch
          %134 = sbr.rel (%p132) target = $region24
        $region23: #{tpu_custom_call.1} parent=15 // pred_region
          %s135 = sand.u32 %s53, 1
          %s136 = scalar_lea.sflag [#allocation6], %s135
          %s137 = sand.u32 %s53, 1
          %s138 = smul.addr %s137, 8
          %s139 = scalar_lea.vmem [#allocation5], %s138
          %s141 = ssub.s32 128, 128
          %142 = vsyncadd %s136, %s141
          %s143 = smul.addr %s17, 128
          %s144 = scalar_lea.hbm %s1, %s143
          %s146 = sshll.u32 %s139, 4
          %s147 = int_to_ptr.vmem [resolvable:$true] %s146
          %149 = dma.hbm_to_vmem [thread:$0]  %s144, 128, %s147, %s136
        $region24: #{tpu_custom_call.1} parent=15 // pred_fallthru
          _
      $region16: #{tpu_custom_call.1} parent=5 // pred_fallthru
        _
      %p150 = scmp.le.s32.totalorder 1, %s17
      %p151 = scmp.lt.s32.totalorder %s17, 3
      %p152 = pnand %p150, %p151
      %p153 = pneg %p152
      // Predicated region
      $region25: #{tpu_custom_call.1} parent=5 // pred_check
        _
      $region26: #{tpu_custom_call.1} parent=5 // pred_check_branch
        %155 = sbr.rel (%p152) target = $region28
      $region27: #{tpu_custom_call.1} parent=5 // pred_region
        %s156 = ssub.s32 %s17, 1
        %s157 = sand.u32 %s30, 1
        %s158 = scalar_lea.sflag [#allocation3], %s157
        %s159 = sand.u32 %s30, 1
        %s160 = smul.addr %s159, 8
        %s161 = scalar_lea.vmem [#allocation2], %s160
        // Predicated region
        $region29: #{tpu_custom_call.1} parent=27 // pred_check
          %p162 = pneg %p43
        $region30: #{tpu_custom_call.1} parent=27 // pred_check_branch
          %164 = sbr.rel (%p162) target = $region32
        $region31: #{tpu_custom_call.1} parent=27 // pred_region
          %165 = dma.done %s158, 128
        $region32: #{tpu_custom_call.1} parent=27 // pred_fallthru
          _
        %s166 = sand.u32 %s56, 1
        %s167 = scalar_lea.sflag [#allocation6], %s166
        %s168 = sand.u32 %s56, 1
        %s169 = smul.addr %s168, 8
        %s170 = scalar_lea.vmem [#allocation5], %s169
        // Predicated region
        $region33: #{tpu_custom_call.1} parent=27 // pred_check
          %p171 = pneg %p69
        $region34: #{tpu_custom_call.1} parent=27 // pred_check_branch
          %173 = sbr.rel (%p171) target = $region36
        $region35: #{tpu_custom_call.1} parent=27 // pred_region
          %174 = dma.done %s167, 128
        $region36: #{tpu_custom_call.1} parent=27 // pred_fallthru
          _
        %s175 = sand.u32 %s30, 1
        %s176 = scalar_lea.sflag [#allocation3], %s175
        %s177 = sand.u32 %s30, 1
        %s178 = smul.addr %s177, 8
        %s179 = scalar_lea.vmem [#allocation2], %s178
        %p180 = pneg %p43
        %p181 = pneg %p40
        %s182 = sand.u32 %s56, 1
        %s183 = scalar_lea.sflag [#allocation6], %s182
        %s184 = sand.u32 %s56, 1
        %s185 = smul.addr %s184, 8
        %s186 = scalar_lea.vmem [#allocation5], %s185
        %p187 = pneg %p69
        %p188 = pneg %p66
        %p189 = pneg %p95
        %p190 = pneg %p92
        %s191 = sand.u32 %s82, 1
        %s192 = scalar_lea.sflag [#allocation4], %s191
        %s193 = sand.u32 %s82, 1
        %s194 = smul.addr %s193, 8
        %s195 = scalar_lea.vmem [#allocation7], %s194
        %v196 = vld [vmem:[%s161] sm:$0xff]
        %v197 = vld [vmem:[%s170] sm:$0xff]
        %v198 = vand.u32 2147483647, %v196
        %v199 = vsub.f32 0.0, %v198
        %v200 = vmul.f32 %v199, 1.442695
        %v201 = vpow.pop %v200
        %v202 = vadd.f32 %v201, 1.0
        %v203 = vrcp.pop %v202
        %v204 = vmul.f32 %v202, %v203
        %v205 = vsub.f32 2.0, %v204
        %v206 = vmul.f32 %v203, %v205
        %vm207 = vcmp.ge.f32.partialorder %v196, 0.0
        %v208 = vmul.f32 %v201, %v206
        %v209 = vsel %vm207, %v206, %v208
        %vm210 = vcmp.eq.f32.partialorder %v197, 1.0
        %v211 = vsub.f32 1.0, %v209
        %v212 = vsel %vm210, %v211, %v209
        %v213 = vsel %vm210, 0.25, 0.75
        %v214 = vmul.f32 %v213, %v212
        %v215 = vmul.f32 %v214, %v212
        %v216 = vmax.f32 %v196, 0.0
        %v217 = vmul.f32 %v196, %v197
        %v218 = vsub.f32 %v216, %v217
        %v219 = vadd.f32 %v201, 1.0
        %v220 = vlog2.pop %v219
        %v221 = vmul.f32 %v220, 0.6931472
        %v222 = vmul.f32 -0.5, %v201
        %v223 = vadd.f32 %v222, 1.0
        %v224 = vmul.f32 %v223, %v201
        %v225 = vand.u32 2147483647, %v201
        %vm226 = vcmp.lt.f32.partialorder %v225, 0.0004427343
        %v227 = vsel %vm226, %v224, %v221
        %v228 = vadd.f32 %v218, %v227
        %v229 = vmul.f32 %v228, %v215
        %v230 = vadd.f32 %v229, 0.0
        %231 = vst [vmem:[%s195] sm:$0xff] %v230
        %s232 = sand.u32 %s82, 1
        %s233 = scalar_lea.sflag [#allocation4], %s232
        %s234 = sand.u32 %s82, 1
        %s235 = smul.addr %s234, 8
        %s236 = scalar_lea.vmem [#allocation7], %s235
        // Predicated region
        $region37: #{tpu_custom_call.1} parent=27 // pred_check
          %p237 = pneg %p92
        $region38: #{tpu_custom_call.1} parent=27 // pred_check_branch
          %239 = sbr.rel (%p237) target = $region40
        $region39: #{tpu_custom_call.1} parent=27 // pred_region
          %s241 = ssub.s32 128, 128
          %242 = vsyncadd %s233, %s241
          %s243 = smul.addr %s22, 128
          %s244 = scalar_lea.hbm %s2, %s243
          %s246 = sshll.u32 %s236, 4
          %s247 = int_to_ptr.vmem [resolvable:$true] %s246
          %249 = dma.vmem_to_hbm [thread:$0]  %s247, 128, %s244, %s233
        $region40: #{tpu_custom_call.1} parent=27 // pred_fallthru
          _
      $region28: #{tpu_custom_call.1} parent=5 // pred_fallthru
        _
      %p250 = scmp.le.s32.totalorder 2, %s17
      // Predicated region
      $region41: #{tpu_custom_call.1} parent=5 // pred_check
        %p251 = pneg %p250
      $region42: #{tpu_custom_call.1} parent=5 // pred_check_branch
        %253 = sbr.rel (%p251) target = $region44
      $region43: #{tpu_custom_call.1} parent=5 // pred_region
        %s254 = ssub.s32 %s17, 2
        // Predicated region
        $region45: #{tpu_custom_call.1} parent=43 // pred_check
          %p255 = pneg %p98
        $region46: #{tpu_custom_call.1} parent=43 // pred_check_branch
          %257 = sbr.rel (%p255) target = $region48
        $region47: #{tpu_custom_call.1} parent=43 // pred_region
          %s258 = sand.u32 %s83, 1
          %s259 = scalar_lea.sflag [#allocation4], %s258
          %s260 = sand.u32 %s83, 1
          %s261 = smul.addr %s260, 8
          %s262 = scalar_lea.vmem [#allocation7], %s261
          %263 = dma.done %s259, 128
        $region48: #{tpu_custom_call.1} parent=43 // pred_fallthru
          _
      $region44: #{tpu_custom_call.1} parent=5 // pred_fallthru
        _
    $region6: #{tpu_custom_call.1} parent=1 // loop_footer
      %s21 = sadd.s32 1, %s17
    $region7: #{tpu_custom_call.1} parent=1 // loop_footer_branch
      %16 = sbr.rel target = $region3
    $region8: #{tpu_custom_call.1} parent=1 // loop_exit
      _
    %264 = vsyncpa [#allocation3], 1
    %s265 = scalar_lea.sflag [#allocation3], 1
    %266 = vsyncpa %s265, 1
    %267 = vsyncpa [#allocation6], 1
    %s268 = scalar_lea.sflag [#allocation6], 1
    %269 = vsyncpa %s268, 1
    %270 = vsyncpa [#allocation4], 1
    %s271 = scalar_lea.sflag [#allocation4], 1
    %272 = vsyncpa %s271, 1

</llo_original>
